<compile_context>
chip_gen: v6e
topology: v6e:2x2x1
jax: 0.10.0
libtpu: 0.0.40
codegen_flags: <defaults>
</compile_context>

<pallas_src>
import functools

import jax
import jax.numpy as jnp
from jax.experimental import pallas as pl
from jax.experimental.pallas import tpu as pltpu


def _round_up(x, m):
    return ((x + m - 1) // m) * m


def _chunk_size(t, target):
    """Largest divisor of t that is <= target (so the chunked grid tiles T exactly)."""
    for c in range(min(target, t), 0, -1):
        if t % c == 0:
            return c
    return 1


def _rec_nn_chunk_kernel(x_ref, h0_ref, wx_ref, wh_ref, b_ref,
                         out_ref, hlast_ref, h_scratch):
    """One grid step == one chunk of TT time steps.

    x_ref   : [TT*B_pad, I]      this chunk's inputs (time-major, flattened)
    h0_ref  : [B_pad, H]         initial hidden state (used only on chunk 0)
    wx_ref  : [I, N]             input-part weights   (N = o_pad + H)
    wh_ref  : [H, N]             hidden-part weights
    b_ref   : [1, N]             fused bias (f32; padded logit lanes = -1e30)
    out_ref : [TT*B_pad, o_pad]  lane-dense log-probs for this chunk
    hlast_ref: [B_pad, H]        final hidden state (written on last chunk only)
    h_scratch: [B_pad, H] f32    hidden state, persists across grid steps
    """
    c = pl.program_id(0)
    b_pad, hid_size = h0_ref.shape
    tt = x_ref.shape[0] // b_pad
    o_pad = out_ref.shape[1]

    @pl.when(c == 0)
    def _():
        h_scratch[...] = h0_ref[...]

    # Phase 1: chunk-wide input projection — one wide MXU pass over TT*B rows.
    xproj = jnp.dot(x_ref[...].astype(wx_ref.dtype), wx_ref[...],
                    preferred_element_type=jnp.float32) + b_ref[...]

    # Phase 2: serial recurrence over the chunk.  Only the small [B,H] @ [H,N]
    # matmul is on the true critical path; the loop is fully unrolled (tt is a
    # small static int) so the scheduler can overlap softmax(t) with matmul(t+1).
    h = h_scratch[...]
    for t in range(tt):
        r0 = t * b_pad
        slab = xproj[r0:r0 + b_pad, :] + jnp.dot(
            h.astype(wh_ref.dtype), wh_ref[...],
            preferred_element_type=jnp.float32)

        logits = slab[:, :o_pad]      # padded lanes carry -1e30 bias
        h = slab[:, o_pad:]           # new hidden state (no nonlinearity in recNN)

        # LogSoftmax over the feature axis, f32.  Padded lanes: max ignores
        # them and exp(-1e30 - m) underflows to exactly 0.
        m = jnp.max(logits, axis=1, keepdims=True)
        shifted = logits - m
        lse = jnp.log(jnp.sum(jnp.exp(shifted), axis=1, keepdims=True))
        out_ref[r0:r0 + b_pad, :] = (shifted - lse).astype(out_ref.dtype)

    h_scratch[...] = h

    @pl.when(c == pl.num_programs(0) - 1)
    def _():
        hlast_ref[...] = h.astype(hlast_ref.dtype)


def prepare_params(w_hid, b_hid, w_out, b_out, input_size, *,
                   matmul_dtype=jnp.bfloat16):
    """One-time packing of the PyTorch-layout weights.

    w_hid: [H, I+H], b_hid: [H]   (in_to_hid)
    w_out: [O, I+H], b_out: [O]   (in_to_out)

    Returns (wx [I, N], wh [H, N], bias [1, N]) with N = o_pad + H:
      cols [0, O)        : output head   (cols [O, o_pad) are zero weights)
      cols [o_pad, N)    : hidden head   (o_pad = roundup(O, 128), lane-dense)
    Bias row: b_out | -1e30 (softmax mask for padded logit lanes) | b_hid.

    Weights default to bf16 (MXU-native on v5e/v6e/v7x); the bias MUST stay
    f32 so the -1e30 softmax mask is exact.  Accumulation/softmax are f32.
    """
    hidden_size, fan_in = w_hid.shape
    output_size = w_out.shape[0]
    assert fan_in == input_size + hidden_size
    I, H, O = input_size, hidden_size, output_size

    o_pad = _round_up(max(O, 1), 128)
    n = o_pad + H

    wx = jnp.zeros((I, n), jnp.float32)
    wx = wx.at[:, :O].set(w_out[:, :I].T)
    wx = wx.at[:, o_pad:].set(w_hid[:, :I].T)

    wh = jnp.zeros((H, n), jnp.float32)
    wh = wh.at[:, :O].set(w_out[:, I:].T)
    wh = wh.at[:, o_pad:].set(w_hid[:, I:].T)

    b = jnp.zeros((1, n), jnp.float32)
    b = b.at[0, :O].set(b_out)
    b = b.at[0, O:o_pad].set(-1e30)     # exclude padded logit lanes from softmax
    b = b.at[0, o_pad:].set(b_hid)

    return wx.astype(matmul_dtype), wh.astype(matmul_dtype), b


@functools.partial(jax.jit, static_argnames=("output_size", "chunk"))
def rec_nn_sequence(xs, h0, wx, wh, b, *, output_size, chunk=8):
    """Run the recNN recurrence over a whole sequence in one pallas_call.

    xs: [T, B, I]   h0: [B, H]   (wx, wh, b) from prepare_params.
    Returns (log_probs [T, B, O], final_hidden [B, H]) — identical to looping
    recNN.forward over t and collecting the outputs.
    """
    T, B, I = xs.shape
    H = h0.shape[1]
    n = b.shape[1]
    o_pad = n - H

    b_pad = _round_up(max(B, 1), 8)            # full (8,128) sublane tiles
    tt = _chunk_size(T, chunk)                 # time steps per grid iteration

    xs_p = xs.astype(jnp.float32)
    h0_p = h0.astype(jnp.float32)
    if b_pad != B:
        xs_p = jnp.pad(xs_p, ((0, 0), (0, b_pad - B), (0, 0)))
        h0_p = jnp.pad(h0_p, ((0, b_pad - B), (0, 0)))
    x2d = xs_p.reshape(T * b_pad, I)           # time-major flatten, done once

    grid_spec = pltpu.PrefetchScalarGridSpec(
        num_scalar_prefetch=0,
        grid=(T // tt,),
        in_specs=[
            pl.BlockSpec((tt * b_pad, I), lambda c: (c, 0)),   # x chunk, streamed
            pl.BlockSpec((b_pad, H), lambda c: (0, 0)),        # h0 (loaded once)
            pl.BlockSpec((I, n), lambda c: (0, 0)),            # W_x, VMEM-resident
            pl.BlockSpec((H, n), lambda c: (0, 0)),            # W_h, VMEM-resident
            pl.BlockSpec((1, n), lambda c: (0, 0)),            # bias, VMEM-resident
        ],
        out_specs=(
            pl.BlockSpec((tt * b_pad, o_pad), lambda c: (c, 0)),  # lane-dense log-probs
            pl.BlockSpec((b_pad, H), lambda c: (0, 0)),           # final hidden state
        ),
        scratch_shapes=[pltpu.VMEM((b_pad, H), jnp.float32)],      # persistent h
    )

    out2d, h_last = pl.pallas_call(
        _rec_nn_chunk_kernel,
        out_shape=(jax.ShapeDtypeStruct((T * b_pad, o_pad), jnp.float32),
                   jax.ShapeDtypeStruct((b_pad, H), jnp.float32)),
        grid_spec=grid_spec,
        compiler_params=pltpu.CompilerParams(
            # time axis is a true recurrence -> must stay serial
            dimension_semantics=("arbitrary",),
            vmem_limit_bytes=32 * 1024 * 1024),
    )(x2d, h0_p, wx, wh, b)

    out = out2d.reshape(T, b_pad, o_pad)[:, :B, :output_size]
    return out, h_last[:B]


def rec_nn_forward(x, h, wx, wh, b, *, output_size):
    """Exact recNN.forward semantics (single step): returns (log_probs, new_hidden)."""
    outs, h_new = rec_nn_sequence(x[None], h, wx, wh, b, output_size=output_size)
    return outs[0], h_new


def init_params(key, input_size, hidden_size, output_size):
    """Deterministic init mimicking nn.Linear default (uniform +/- 1/sqrt(fan_in))."""
    k1, k2, k3, k4 = jax.random.split(key, 4)
    fan_in = input_size + hidden_size
    bound = 1.0 / jnp.sqrt(fan_in)
    w_hid = jax.random.uniform(k1, (hidden_size, fan_in), jnp.float32, -bound, bound)
    b_hid = jax.random.uniform(k2, (hidden_size,), jnp.float32, -bound, bound)
    w_out = jax.random.uniform(k3, (output_size, fan_in), jnp.float32, -bound, bound)
    b_out = jax.random.uniform(k4, (output_size,), jnp.float32, -bound, bound)
    return w_hid, b_hid, w_out, b_out


if __name__ == "__main__":
    input_size, hidden_size, output_size = 16, 32, 8
    batch, seq_len = 2, 8

    key = jax.random.PRNGKey(0)
    kx, kh, kp = jax.random.split(key, 3)
    xs = jax.random.normal(kx, (seq_len, batch, input_size), jnp.float32)
    h0 = jax.random.normal(kh, (batch, hidden_size), jnp.float32)
    w_hid, b_hid, w_out, b_out = init_params(kp, input_size, hidden_size, output_size)

    # Pure-JAX reference.
    def ref_step(h, x):
        combined = jnp.concatenate([x, h], axis=1)
        new_h = combined @ w_hid.T + b_hid
        logits = combined @ w_out.T + b_out
        return new_h, jax.nn.log_softmax(logits, axis=1)

    ref_h_last, ref_outs = jax.lax.scan(ref_step, h0, xs)
    ref_h1, ref_out1 = ref_step(h0, xs[0])

    # ---- f32-weight path: exact-precision correctness checks. -------------
    wx32, wh32, b32 = prepare_params(w_hid, b_hid, w_out, b_out, input_size,
                                     matmul_dtype=jnp.float32)

    # Full sequence in one chunk (T == TT).
    outs, h_last = rec_nn_sequence(xs, h0, wx32, wh32, b32,
                                   output_size=output_size, chunk=8)
    outs, h_last = jax.block_until_ready((outs, h_last))
    assert outs.shape == (seq_len, batch, output_size)
    assert h_last.shape == (batch, hidden_size)
    assert jnp.allclose(outs, ref_outs, atol=1e-4, rtol=1e-4), "sequence log_softmax mismatch"
    assert jnp.allclose(h_last, ref_h_last, atol=1e-4, rtol=1e-4), "final hidden mismatch"

    # Multiple chunks (exercises cross-chunk hidden-state carry).
    outs_c, h_last_c = rec_nn_sequence(xs, h0, wx32, wh32, b32,
                                       output_size=output_size, chunk=2)
    outs_c, h_last_c = jax.block_until_ready((outs_c, h_last_c))
    assert jnp.allclose(outs_c, ref_outs, atol=1e-4, rtol=1e-4), "chunked sequence mismatch"
    assert jnp.allclose(h_last_c, ref_h_last, atol=1e-4, rtol=1e-4), "chunked hidden mismatch"

    # Single step (matches recNN.forward exactly).
    out1, h1 = rec_nn_forward(xs[0], h0, wx32, wh32, b32, output_size=output_size)
    out1, h1 = jax.block_until_ready((out1, h1))
    assert jnp.allclose(out1, ref_out1, atol=1e-5, rtol=1e-5), "single-step output mismatch"
    assert jnp.allclose(h1, ref_h1, atol=1e-5, rtol=1e-5), "single-step hidden mismatch"

    # ---- Default (bf16-weight) fast path on all TPU generations. ----------
    wx_bf, wh_bf, b_bf = prepare_params(w_hid, b_hid, w_out, b_out, input_size)
    outs_bf, h_bf = rec_nn_sequence(xs, h0, wx_bf, wh_bf, b_bf,
                                    output_size=output_size)
    outs_bf, h_bf = jax.block_until_ready((outs_bf, h_bf))
    assert jnp.all(jnp.isfinite(outs_bf)) and jnp.all(jnp.isfinite(h_bf))
    assert jnp.allclose(outs_bf, ref_outs, atol=2e-1, rtol=1e-1), "bf16 path diverged"
    assert jnp.allclose(h_bf, ref_h_last, atol=2e-1, rtol=1e-1), "bf16 hidden diverged"

    print("KERNEL_OK")
</pallas_src>

<mosaic_0001>
module attributes {stable_mosaic.version = 11 : i64} {
  func.func @_rec_nn_chunk_kernel(%arg0: i32, %arg1: memref<64x16xf32, #tpu.memory_space<vmem>>, %arg2: memref<8x32xf32, #tpu.memory_space<vmem>>, %arg3: memref<16x160xf32, #tpu.memory_space<vmem>>, %arg4: memref<32x160xf32, #tpu.memory_space<vmem>>, %arg5: memref<1x160xf32, #tpu.memory_space<vmem>>, %arg6: memref<64x128xf32, #tpu.memory_space<vmem>>, %arg7: memref<8x32xf32, #tpu.memory_space<vmem>>, %arg8: memref<8x32xf32, #tpu.memory_space<vmem>>) attributes {dimension_semantics = [#tpu.dimension_semantics<arbitrary>], iteration_bounds = array<i64: 1>, scalar_prefetch = 0 : i64, scratch_operands = 1 : i64, tpu.core_type = #tpu.core_type<tc>, window_params = [{transform_indices = @transform_0, window_bounds = array<i64: 64, 16>}, {pipeline_mode = #tpu.pipeline_mode<synchronous>, transform_indices = @transform_1, window_bounds = array<i64: 8, 32>}, {pipeline_mode = #tpu.pipeline_mode<synchronous>, transform_indices = @transform_2, window_bounds = array<i64: 16, 160>}, {pipeline_mode = #tpu.pipeline_mode<synchronous>, transform_indices = @transform_3, window_bounds = array<i64: 32, 160>}, {pipeline_mode = #tpu.pipeline_mode<synchronous>, transform_indices = @transform_4, window_bounds = array<i64: 1, 160>}, {transform_indices = @transform_5, window_bounds = array<i64: 64, 128>}, {pipeline_mode = #tpu.pipeline_mode<synchronous>, transform_indices = @transform_6, window_bounds = array<i64: 8, 32>}]} {
    %c0_i32 = arith.constant 0 : i32
    %0 = arith.cmpi eq, %arg0, %c0_i32 : i32
    %1 = arith.extui %0 : i1 to i32
    %c0_i32_0 = arith.constant 0 : i32
    %2 = arith.cmpi ne, %1, %c0_i32_0 : i32
    scf.if %2 {
      %c0_61 = arith.constant 0 : index
      %c0_62 = arith.constant 0 : index
      %150 = vector.load %arg2[%c0_61, %c0_62] : memref<8x32xf32, #tpu.memory_space<vmem>>, vector<8x32xf32>
      %c0_63 = arith.constant 0 : index
      %c0_64 = arith.constant 0 : index
      %151 = vector.load %arg8[%c0_63, %c0_64] : memref<8x32xf32, #tpu.memory_space<vmem>>, vector<8x32xf32>
      tpu.vector_store %arg8[%c0_63, %c0_64], %150 {strides = array<i32>} : memref<8x32xf32, #tpu.memory_space<vmem>>, vector<8x32xf32>,
    } else {
    }
    %c0 = arith.constant 0 : index
    %c0_1 = arith.constant 0 : index
    %3 = vector.load %arg1[%c0, %c0_1] : memref<64x16xf32, #tpu.memory_space<vmem>>, vector<64x16xf32>
    %c0_2 = arith.constant 0 : index
    %c0_3 = arith.constant 0 : index
    %4 = vector.load %arg3[%c0_2, %c0_3] : memref<16x160xf32, #tpu.memory_space<vmem>>, vector<16x160xf32>
    %cst = arith.constant dense<0.000000e+00> : vector<64x160xf32>
    %5 = tpu.matmul %3, %4, %cst {dimension_numbers = #tpu.dot_dimension_numbers<[1], [0], [0], [1], [0, 0, 1, 1], [], []>} : vector<64x16xf32>, vector<16x160xf32>, vector<64x160xf32> -> vector<64x160xf32>
    %c0_4 = arith.constant 0 : index
    %c0_5 = arith.constant 0 : index
    %6 = vector.load %arg5[%c0_4, %c0_5] : memref<1x160xf32, #tpu.memory_space<vmem>>, vector<1x160xf32>
    %7 = vector.broadcast %6 : vector<1x160xf32> to vector<64x160xf32>
    %8 = arith.addf %5, %7 : vector<64x160xf32>
    %c0_6 = arith.constant 0 : index
    %c0_7 = arith.constant 0 : index
    %9 = vector.load %arg8[%c0_6, %c0_7] : memref<8x32xf32, #tpu.memory_space<vmem>>, vector<8x32xf32>
    %10 = vector.extract_strided_slice %8 {offsets = [0, 0], sizes = [8, 160], strides = [1, 1]} : vector<64x160xf32> to vector<8x160xf32>
    %c0_8 = arith.constant 0 : index
    %c0_9 = arith.constant 0 : index
    %11 = vector.load %arg4[%c0_8, %c0_9] : memref<32x160xf32, #tpu.memory_space<vmem>>, vector<32x160xf32>
    %cst_10 = arith.constant dense<0.000000e+00> : vector<8x160xf32>
    %12 = tpu.matmul %9, %11, %cst_10 {dimension_numbers = #tpu.dot_dimension_numbers<[1], [0], [0], [1], [0, 0, 1, 1], [], []>} : vector<8x32xf32>, vector<32x160xf32>, vector<8x160xf32> -> vector<8x160xf32>
    %13 = arith.addf %10, %12 : vector<8x160xf32>
    %14 = vector.extract_strided_slice %13 {offsets = [0, 0], sizes = [8, 128], strides = [1, 1]} : vector<8x160xf32> to vector<8x128xf32>
    %15 = vector.extract_strided_slice %13 {offsets = [0, 128], sizes = [8, 32], strides = [1, 1]} : vector<8x160xf32> to vector<8x32xf32>
    %cst_11 = arith.constant dense<0xFF800000> : vector<8xf32>
    %16 = vector.multi_reduction <maximumf>, %14, %cst_11 [1] : vector<8x128xf32> to vector<8xf32>
    %17 = vector.shape_cast %16 : vector<8xf32> to vector<8x1xf32>
    %18 = vector.broadcast %17 : vector<8x1xf32> to vector<8x128xf32>
    %19 = arith.subf %14, %18 : vector<8x128xf32>
    %20 = math.exp %19 : vector<8x128xf32>
    %cst_12 = arith.constant dense<0.000000e+00> : vector<8xf32>
    %21 = vector.multi_reduction <add>, %20, %cst_12 [1] : vector<8x128xf32> to vector<8xf32>
    %22 = vector.shape_cast %21 : vector<8xf32> to vector<8x1xf32>
    %23 = math.log %22 : vector<8x1xf32>
    %24 = vector.broadcast %23 : vector<8x1xf32> to vector<8x128xf32>
    %25 = arith.subf %19, %24 : vector<8x128xf32>
    %c0_13 = arith.constant 0 : index
    %c0_14 = arith.constant 0 : index
    %26 = vector.load %arg6[%c0_13, %c0_14] : memref<64x128xf32, #tpu.memory_space<vmem>>, vector<8x128xf32>
    tpu.vector_store %arg6[%c0_13, %c0_14], %25 {strides = array<i32>} : memref<64x128xf32, #tpu.memory_space<vmem>>, vector<8x128xf32>,
    %27 = vector.extract_strided_slice %8 {offsets = [8, 0], sizes = [8, 160], strides = [1, 1]} : vector<64x160xf32> to vector<8x160xf32>
    %c0_15 = arith.constant 0 : index
    %c0_16 = arith.constant 0 : index
    %28 = vector.load %arg4[%c0_15, %c0_16] : memref<32x160xf32, #tpu.memory_space<vmem>>, vector<32x160xf32>
    %cst_17 = arith.constant dense<0.000000e+00> : vector<8x160xf32>
    %29 = tpu.matmul %15, %28, %cst_17 {dimension_numbers = #tpu.dot_dimension_numbers<[1], [0], [0], [1], [0, 0, 1, 1], [], []>} : vector<8x32xf32>, vector<32x160xf32>, vector<8x160xf32> -> vector<8x160xf32>
    %30 = arith.addf %27, %29 : vector<8x160xf32>
    %31 = vector.extract_strided_slice %30 {offsets = [0, 0], sizes = [8, 128], strides = [1, 1]} : vector<8x160xf32> to vector<8x128xf32>
    %32 = vector.extract_strided_slice %30 {offsets = [0, 128], sizes = [8, 32], strides = [1, 1]} : vector<8x160xf32> to vector<8x32xf32>
    %cst_18 = arith.constant dense<0xFF800000> : vector<8xf32>
    %33 = vector.multi_reduction <maximumf>, %31, %cst_18 [1] : vector<8x128xf32> to vector<8xf32>
    %34 = vector.shape_cast %33 : vector<8xf32> to vector<8x1xf32>
    %35 = vector.broadcast %34 : vector<8x1xf32> to vector<8x128xf32>
    %36 = arith.subf %31, %35 : vector<8x128xf32>
    %37 = math.exp %36 : vector<8x128xf32>
    %cst_19 = arith.constant dense<0.000000e+00> : vector<8xf32>
    %38 = vector.multi_reduction <add>, %37, %cst_19 [1] : vector<8x128xf32> to vector<8xf32>
    %39 = vector.shape_cast %38 : vector<8xf32> to vector<8x1xf32>
    %40 = math.log %39 : vector<8x1xf32>
    %41 = vector.broadcast %40 : vector<8x1xf32> to vector<8x128xf32>
    %42 = arith.subf %36, %41 : vector<8x128xf32>
    %c8 = arith.constant 8 : index
    %c0_20 = arith.constant 0 : index
    %43 = vector.load %arg6[%c8, %c0_20] : memref<64x128xf32, #tpu.memory_space<vmem>>, vector<8x128xf32>
    tpu.vector_store %arg6[%c8, %c0_20], %42 {strides = array<i32>} : memref<64x128xf32, #tpu.memory_space<vmem>>, vector<8x128xf32>,
    %44 = vector.extract_strided_slice %8 {offsets = [16, 0], sizes = [8, 160], strides = [1, 1]} : vector<64x160xf32> to vector<8x160xf32>
    %c0_21 = arith.constant 0 : index
    %c0_22 = arith.constant 0 : index
    %45 = vector.load %arg4[%c0_21, %c0_22] : memref<32x160xf32, #tpu.memory_space<vmem>>, vector<32x160xf32>
    %cst_23 = arith.constant dense<0.000000e+00> : vector<8x160xf32>
    %46 = tpu.matmul %32, %45, %cst_23 {dimension_numbers = #tpu.dot_dimension_numbers<[1], [0], [0], [1], [0, 0, 1, 1], [], []>} : vector<8x32xf32>, vector<32x160xf32>, vector<8x160xf32> -> vector<8x160xf32>
    %47 = arith.addf %44, %46 : vector<8x160xf32>
    %48 = vector.extract_strided_slice %47 {offsets = [0, 0], sizes = [8, 128], strides = [1, 1]} : vector<8x160xf32> to vector<8x128xf32>
    %49 = vector.extract_strided_slice %47 {offsets = [0, 128], sizes = [8, 32], strides = [1, 1]} : vector<8x160xf32> to vector<8x32xf32>
    %cst_24 = arith.constant dense<0xFF800000> : vector<8xf32>
    %50 = vector.multi_reduction <maximumf>, %48, %cst_24 [1] : vector<8x128xf32> to vector<8xf32>
    %51 = vector.shape_cast %50 : vector<8xf32> to vector<8x1xf32>
    %52 = vector.broadcast %51 : vector<8x1xf32> to vector<8x128xf32>
    %53 = arith.subf %48, %52 : vector<8x128xf32>
    %54 = math.exp %53 : vector<8x128xf32>
    %cst_25 = arith.constant dense<0.000000e+00> : vector<8xf32>
    %55 = vector.multi_reduction <add>, %54, %cst_25 [1] : vector<8x128xf32> to vector<8xf32>
    %56 = vector.shape_cast %55 : vector<8xf32> to vector<8x1xf32>
    %57 = math.log %56 : vector<8x1xf32>
    %58 = vector.broadcast %57 : vector<8x1xf32> to vector<8x128xf32>
    %59 = arith.subf %53, %58 : vector<8x128xf32>
    %c16 = arith.constant 16 : index
    %c0_26 = arith.constant 0 : index
    %60 = vector.load %arg6[%c16, %c0_26] : memref<64x128xf32, #tpu.memory_space<vmem>>, vector<8x128xf32>
    tpu.vector_store %arg6[%c16, %c0_26], %59 {strides = array<i32>} : memref<64x128xf32, #tpu.memory_space<vmem>>, vector<8x128xf32>,
    %61 = vector.extract_strided_slice %8 {offsets = [24, 0], sizes = [8, 160], strides = [1, 1]} : vector<64x160xf32> to vector<8x160xf32>
    %c0_27 = arith.constant 0 : index
    %c0_28 = arith.constant 0 : index
    %62 = vector.load %arg4[%c0_27, %c0_28] : memref<32x160xf32, #tpu.memory_space<vmem>>, vector<32x160xf32>
    %cst_29 = arith.constant dense<0.000000e+00> : vector<8x160xf32>
    %63 = tpu.matmul %49, %62, %cst_29 {dimension_numbers = #tpu.dot_dimension_numbers<[1], [0], [0], [1], [0, 0, 1, 1], [], []>} : vector<8x32xf32>, vector<32x160xf32>, vector<8x160xf32> -> vector<8x160xf32>
    %64 = arith.addf %61, %63 : vector<8x160xf32>
    %65 = vector.extract_strided_slice %64 {offsets = [0, 0], sizes = [8, 128], strides = [1, 1]} : vector<8x160xf32> to vector<8x128xf32>
    %66 = vector.extract_strided_slice %64 {offsets = [0, 128], sizes = [8, 32], strides = [1, 1]} : vector<8x160xf32> to vector<8x32xf32>
    %cst_30 = arith.constant dense<0xFF800000> : vector<8xf32>
    %67 = vector.multi_reduction <maximumf>, %65, %cst_30 [1] : vector<8x128xf32> to vector<8xf32>
    %68 = vector.shape_cast %67 : vector<8xf32> to vector<8x1xf32>
    %69 = vector.broadcast %68 : vector<8x1xf32> to vector<8x128xf32>
    %70 = arith.subf %65, %69 : vector<8x128xf32>
    %71 = math.exp %70 : vector<8x128xf32>
    %cst_31 = arith.constant dense<0.000000e+00> : vector<8xf32>
    %72 = vector.multi_reduction <add>, %71, %cst_31 [1] : vector<8x128xf32> to vector<8xf32>
    %73 = vector.shape_cast %72 : vector<8xf32> to vector<8x1xf32>
    %74 = math.log %73 : vector<8x1xf32>
    %75 = vector.broadcast %74 : vector<8x1xf32> to vector<8x128xf32>
    %76 = arith.subf %70, %75 : vector<8x128xf32>
    %c24 = arith.constant 24 : index
    %c0_32 = arith.constant 0 : index
    %77 = vector.load %arg6[%c24, %c0_32] : memref<64x128xf32, #tpu.memory_space<vmem>>, vector<8x128xf32>
    tpu.vector_store %arg6[%c24, %c0_32], %76 {strides = array<i32>} : memref<64x128xf32, #tpu.memory_space<vmem>>, vector<8x128xf32>,
    %78 = vector.extract_strided_slice %8 {offsets = [32, 0], sizes = [8, 160], strides = [1, 1]} : vector<64x160xf32> to vector<8x160xf32>
    %c0_33 = arith.constant 0 : index
    %c0_34 = arith.constant 0 : index
    %79 = vector.load %arg4[%c0_33, %c0_34] : memref<32x160xf32, #tpu.memory_space<vmem>>, vector<32x160xf32>
    %cst_35 = arith.constant dense<0.000000e+00> : vector<8x160xf32>
    %80 = tpu.matmul %66, %79, %cst_35 {dimension_numbers = #tpu.dot_dimension_numbers<[1], [0], [0], [1], [0, 0, 1, 1], [], []>} : vector<8x32xf32>, vector<32x160xf32>, vector<8x160xf32> -> vector<8x160xf32>
    %81 = arith.addf %78, %80 : vector<8x160xf32>
    %82 = vector.extract_strided_slice %81 {offsets = [0, 0], sizes = [8, 128], strides = [1, 1]} : vector<8x160xf32> to vector<8x128xf32>
    %83 = vector.extract_strided_slice %81 {offsets = [0, 128], sizes = [8, 32], strides = [1, 1]} : vector<8x160xf32> to vector<8x32xf32>
    %cst_36 = arith.constant dense<0xFF800000> : vector<8xf32>
    %84 = vector.multi_reduction <maximumf>, %82, %cst_36 [1] : vector<8x128xf32> to vector<8xf32>
    %85 = vector.shape_cast %84 : vector<8xf32> to vector<8x1xf32>
    %86 = vector.broadcast %85 : vector<8x1xf32> to vector<8x128xf32>
    %87 = arith.subf %82, %86 : vector<8x128xf32>
    %88 = math.exp %87 : vector<8x128xf32>
    %cst_37 = arith.constant dense<0.000000e+00> : vector<8xf32>
    %89 = vector.multi_reduction <add>, %88, %cst_37 [1] : vector<8x128xf32> to vector<8xf32>
    %90 = vector.shape_cast %89 : vector<8xf32> to vector<8x1xf32>
    %91 = math.log %90 : vector<8x1xf32>
    %92 = vector.broadcast %91 : vector<8x1xf32> to vector<8x128xf32>
    %93 = arith.subf %87, %92 : vector<8x128xf32>
    %c32 = arith.constant 32 : index
    %c0_38 = arith.constant 0 : index
    %94 = vector.load %arg6[%c32, %c0_38] : memref<64x128xf32, #tpu.memory_space<vmem>>, vector<8x128xf32>
    tpu.vector_store %arg6[%c32, %c0_38], %93 {strides = array<i32>} : memref<64x128xf32, #tpu.memory_space<vmem>>, vector<8x128xf32>,
    %95 = vector.extract_strided_slice %8 {offsets = [40, 0], sizes = [8, 160], strides = [1, 1]} : vector<64x160xf32> to vector<8x160xf32>
    %c0_39 = arith.constant 0 : index
    %c0_40 = arith.constant 0 : index
    %96 = vector.load %arg4[%c0_39, %c0_40] : memref<32x160xf32, #tpu.memory_space<vmem>>, vector<32x160xf32>
    %cst_41 = arith.constant dense<0.000000e+00> : vector<8x160xf32>
    %97 = tpu.matmul %83, %96, %cst_41 {dimension_numbers = #tpu.dot_dimension_numbers<[1], [0], [0], [1], [0, 0, 1, 1], [], []>} : vector<8x32xf32>, vector<32x160xf32>, vector<8x160xf32> -> vector<8x160xf32>
    %98 = arith.addf %95, %97 : vector<8x160xf32>
    %99 = vector.extract_strided_slice %98 {offsets = [0, 0], sizes = [8, 128], strides = [1, 1]} : vector<8x160xf32> to vector<8x128xf32>
    %100 = vector.extract_strided_slice %98 {offsets = [0, 128], sizes = [8, 32], strides = [1, 1]} : vector<8x160xf32> to vector<8x32xf32>
    %cst_42 = arith.constant dense<0xFF800000> : vector<8xf32>
    %101 = vector.multi_reduction <maximumf>, %99, %cst_42 [1] : vector<8x128xf32> to vector<8xf32>
    %102 = vector.shape_cast %101 : vector<8xf32> to vector<8x1xf32>
    %103 = vector.broadcast %102 : vector<8x1xf32> to vector<8x128xf32>
    %104 = arith.subf %99, %103 : vector<8x128xf32>
    %105 = math.exp %104 : vector<8x128xf32>
    %cst_43 = arith.constant dense<0.000000e+00> : vector<8xf32>
    %106 = vector.multi_reduction <add>, %105, %cst_43 [1] : vector<8x128xf32> to vector<8xf32>
    %107 = vector.shape_cast %106 : vector<8xf32> to vector<8x1xf32>
    %108 = math.log %107 : vector<8x1xf32>
    %109 = vector.broadcast %108 : vector<8x1xf32> to vector<8x128xf32>
    %110 = arith.subf %104, %109 : vector<8x128xf32>
    %c40 = arith.constant 40 : index
    %c0_44 = arith.constant 0 : index
    %111 = vector.load %arg6[%c40, %c0_44] : memref<64x128xf32, #tpu.memory_space<vmem>>, vector<8x128xf32>
    tpu.vector_store %arg6[%c40, %c0_44], %110 {strides = array<i32>} : memref<64x128xf32, #tpu.memory_space<vmem>>, vector<8x128xf32>,
    %112 = vector.extract_strided_slice %8 {offsets = [48, 0], sizes = [8, 160], strides = [1, 1]} : vector<64x160xf32> to vector<8x160xf32>
    %c0_45 = arith.constant 0 : index
    %c0_46 = arith.constant 0 : index
    %113 = vector.load %arg4[%c0_45, %c0_46] : memref<32x160xf32, #tpu.memory_space<vmem>>, vector<32x160xf32>
    %cst_47 = arith.constant dense<0.000000e+00> : vector<8x160xf32>
    %114 = tpu.matmul %100, %113, %cst_47 {dimension_numbers = #tpu.dot_dimension_numbers<[1], [0], [0], [1], [0, 0, 1, 1], [], []>} : vector<8x32xf32>, vector<32x160xf32>, vector<8x160xf32> -> vector<8x160xf32>
    %115 = arith.addf %112, %114 : vector<8x160xf32>
    %116 = vector.extract_strided_slice %115 {offsets = [0, 0], sizes = [8, 128], strides = [1, 1]} : vector<8x160xf32> to vector<8x128xf32>
    %117 = vector.extract_strided_slice %115 {offsets = [0, 128], sizes = [8, 32], strides = [1, 1]} : vector<8x160xf32> to vector<8x32xf32>
    %cst_48 = arith.constant dense<0xFF800000> : vector<8xf32>
    %118 = vector.multi_reduction <maximumf>, %116, %cst_48 [1] : vector<8x128xf32> to vector<8xf32>
    %119 = vector.shape_cast %118 : vector<8xf32> to vector<8x1xf32>
    %120 = vector.broadcast %119 : vector<8x1xf32> to vector<8x128xf32>
    %121 = arith.subf %116, %120 : vector<8x128xf32>
    %122 = math.exp %121 : vector<8x128xf32>
    %cst_49 = arith.constant dense<0.000000e+00> : vector<8xf32>
    %123 = vector.multi_reduction <add>, %122, %cst_49 [1] : vector<8x128xf32> to vector<8xf32>
    %124 = vector.shape_cast %123 : vector<8xf32> to vector<8x1xf32>
    %125 = math.log %124 : vector<8x1xf32>
    %126 = vector.broadcast %125 : vector<8x1xf32> to vector<8x128xf32>
    %127 = arith.subf %121, %126 : vector<8x128xf32>
    %c48 = arith.constant 48 : index
    %c0_50 = arith.constant 0 : index
    %128 = vector.load %arg6[%c48, %c0_50] : memref<64x128xf32, #tpu.memory_space<vmem>>, vector<8x128xf32>
    tpu.vector_store %arg6[%c48, %c0_50], %127 {strides = array<i32>} : memref<64x128xf32, #tpu.memory_space<vmem>>, vector<8x128xf32>,
    %129 = vector.extract_strided_slice %8 {offsets = [56, 0], sizes = [8, 160], strides = [1, 1]} : vector<64x160xf32> to vector<8x160xf32>
    %c0_51 = arith.constant 0 : index
    %c0_52 = arith.constant 0 : index
    %130 = vector.load %arg4[%c0_51, %c0_52] : memref<32x160xf32, #tpu.memory_space<vmem>>, vector<32x160xf32>
    %cst_53 = arith.constant dense<0.000000e+00> : vector<8x160xf32>
    %131 = tpu.matmul %117, %130, %cst_53 {dimension_numbers = #tpu.dot_dimension_numbers<[1], [0], [0], [1], [0, 0, 1, 1], [], []>} : vector<8x32xf32>, vector<32x160xf32>, vector<8x160xf32> -> vector<8x160xf32>
    %132 = arith.addf %129, %131 : vector<8x160xf32>
    %133 = vector.extract_strided_slice %132 {offsets = [0, 0], sizes = [8, 128], strides = [1, 1]} : vector<8x160xf32> to vector<8x128xf32>
    %134 = vector.extract_strided_slice %132 {offsets = [0, 128], sizes = [8, 32], strides = [1, 1]} : vector<8x160xf32> to vector<8x32xf32>
    %cst_54 = arith.constant dense<0xFF800000> : vector<8xf32>
    %135 = vector.multi_reduction <maximumf>, %133, %cst_54 [1] : vector<8x128xf32> to vector<8xf32>
    %136 = vector.shape_cast %135 : vector<8xf32> to vector<8x1xf32>
    %137 = vector.broadcast %136 : vector<8x1xf32> to vector<8x128xf32>
    %138 = arith.subf %133, %137 : vector<8x128xf32>
    %139 = math.exp %138 : vector<8x128xf32>
    %cst_55 = arith.constant dense<0.000000e+00> : vector<8xf32>
    %140 = vector.multi_reduction <add>, %139, %cst_55 [1] : vector<8x128xf32> to vector<8xf32>
    %141 = vector.shape_cast %140 : vector<8xf32> to vector<8x1xf32>
    %142 = math.log %141 : vector<8x1xf32>
    %143 = vector.broadcast %142 : vector<8x1xf32> to vector<8x128xf32>
    %144 = arith.subf %138, %143 : vector<8x128xf32>
    %c56 = arith.constant 56 : index
    %c0_56 = arith.constant 0 : index
    %145 = vector.load %arg6[%c56, %c0_56] : memref<64x128xf32, #tpu.memory_space<vmem>>, vector<8x128xf32>
    tpu.vector_store %arg6[%c56, %c0_56], %144 {strides = array<i32>} : memref<64x128xf32, #tpu.memory_space<vmem>>, vector<8x128xf32>,
    %c0_57 = arith.constant 0 : index
    %c0_58 = arith.constant 0 : index
    %146 = vector.load %arg8[%c0_57, %c0_58] : memref<8x32xf32, #tpu.memory_space<vmem>>, vector<8x32xf32>
    tpu.vector_store %arg8[%c0_57, %c0_58], %134 {strides = array<i32>} : memref<8x32xf32, #tpu.memory_space<vmem>>, vector<8x32xf32>,
    %c0_i32_59 = arith.constant 0 : i32
    %147 = arith.cmpi eq, %arg0, %c0_i32_59 : i32
    %148 = arith.extui %147 : i1 to i32
    %c0_i32_60 = arith.constant 0 : i32
    %149 = arith.cmpi ne, %148, %c0_i32_60 : i32
    scf.if %149 {
      %c0_61 = arith.constant 0 : index
      %c0_62 = arith.constant 0 : index
      %150 = vector.load %arg7[%c0_61, %c0_62] : memref<8x32xf32, #tpu.memory_space<vmem>>, vector<8x32xf32>
      tpu.vector_store %arg7[%c0_61, %c0_62], %134 {strides = array<i32>} : memref<8x32xf32, #tpu.memory_space<vmem>>, vector<8x32xf32>,
    } else {
    }
    return
  }
  func.func @transform_0(%arg0: i32) -> (i32, i32) {
    %c0_i32 = arith.constant 0 : i32
    %c0_i32_0 = arith.constant 0 : i32
    return %arg0, %c0_i32 : i32, i32
  }
  func.func @transform_1(%arg0: i32) -> (i32, i32) {
    %c0_i32 = arith.constant 0 : i32
    %c0_i32_0 = arith.constant 0 : i32
    %c0_i32_1 = arith.constant 0 : i32
    return %c0_i32, %c0_i32_0 : i32, i32
  }
  func.func @transform_2(%arg0: i32) -> (i32, i32) {
    %c0_i32 = arith.constant 0 : i32
    %c0_i32_0 = arith.constant 0 : i32
    %c0_i32_1 = arith.constant 0 : i32
    return %c0_i32, %c0_i32_0 : i32, i32
  }
  func.func @transform_3(%arg0: i32) -> (i32, i32) {
    %c0_i32 = arith.constant 0 : i32
    %c0_i32_0 = arith.constant 0 : i32
    %c0_i32_1 = arith.constant 0 : i32
    return %c0_i32, %c0_i32_0 : i32, i32
  }
  func.func @transform_4(%arg0: i32) -> (i32, i32) {
    %c0_i32 = arith.constant 0 : i32
    %c0_i32_0 = arith.constant 0 : i32
    %c0_i32_1 = arith.constant 0 : i32
    return %c0_i32, %c0_i32_0 : i32, i32
  }
  func.func @transform_5(%arg0: i32) -> (i32, i32) {
    %c0_i32 = arith.constant 0 : i32
    %c0_i32_0 = arith.constant 0 : i32
    return %arg0, %c0_i32 : i32, i32
  }
  func.func @transform_6(%arg0: i32) -> (i32, i32) {
    %c0_i32 = arith.constant 0 : i32
    %c0_i32_0 = arith.constant 0 : i32
    %c0_i32_1 = arith.constant 0 : i32
    return %c0_i32, %c0_i32_0 : i32, i32
  }
}

</mosaic_0001>

<llo_original>
// kernel: rec_nn_sequence.1
$region0: #{rec_nn_sequence.1}
  #allocation0 [shape = 'u32[]', space=smem, size = 0x4, offset = 0x4, fixed_abs, tag = 'smem constant byte address 0x4 - core index']
  #allocation1 [shape = 'u32[144,128]{1,0:T(1,128)}', space=vmem, size = 0x12000, scoped, tag = 'internal scratch']
  #allocation2 [shape = 'f32[8,32]{1,0:T(8,128)}', space=vmem, size = 0x1000, scoped, tag = 'scratch operand']
  %s0 = inlined_call_operand.vmem [shape: f32[64,16], index: 0, kind: input, shape index: {}]
  %s1 = inlined_call_operand.vmem [shape: f32[8,32], index: 1, kind: input, shape index: {}]
  %s2 = inlined_call_operand.vmem [shape: f32[16,160], index: 2, kind: input, shape index: {}]
  %s3 = inlined_call_operand.vmem [shape: f32[32,160], index: 3, kind: input, shape index: {}]
  %s4 = inlined_call_operand.vmem [shape: f32[1,160], index: 4, kind: input, shape index: {}]
  %s5 = inlined_call_operand.vmem [shape: f32[64,128], index: 5, kind: output, shape index: {0}]
  %s6 = inlined_call_operand.vmem [shape: f32[8,32], index: 6, kind: output, shape index: {1}]
  %7 = xla_tuple %s5, %s6
  %s8 = sld [smem:[#allocation0]]
  $region46: #{rec_nn_sequence.1} parent=0
    _
  %s10 = ssub.s32 1, %s8
  %s11 = scalar_select 0, %s10, %s8
  // Predicated region
  $region2: #{rec_nn_sequence.1} parent=0 // pred_check
    _
  $region3: #{rec_nn_sequence.1} parent=0 // pred_check_branch
    %13 = sbr.rel (0) target = $region5
  $region4: #{rec_nn_sequence.1} parent=0 // pred_region
    _
  $region5: #{rec_nn_sequence.1} parent=0 // pred_fallthru
    _
  // Predicated region
  $region6: #{rec_nn_sequence.1} parent=0 // pred_check
    _
  $region7: #{rec_nn_sequence.1} parent=0 // pred_check_branch
    %15 = sbr.rel (0) target = $region9
  $region8: #{rec_nn_sequence.1} parent=0 // pred_region
    _
  $region9: #{rec_nn_sequence.1} parent=0 // pred_fallthru
    _
  // Predicated region
  $region10: #{rec_nn_sequence.1} parent=0 // pred_check
    _
  $region11: #{rec_nn_sequence.1} parent=0 // pred_check_branch
    %17 = sbr.rel (0) target = $region13
  $region12: #{rec_nn_sequence.1} parent=0 // pred_region
    _
  $region13: #{rec_nn_sequence.1} parent=0 // pred_fallthru
    _
  // Predicated region
  $region14: #{rec_nn_sequence.1} parent=0 // pred_check
    _
  $region15: #{rec_nn_sequence.1} parent=0 // pred_check_branch
    %19 = sbr.rel (0) target = $region17
  $region16: #{rec_nn_sequence.1} parent=0 // pred_region
    _
  $region17: #{rec_nn_sequence.1} parent=0 // pred_fallthru
    _
  // Predicated region
  $region18: #{rec_nn_sequence.1} parent=0 // pred_check
    _
  $region19: #{rec_nn_sequence.1} parent=0 // pred_check_branch
    %21 = sbr.rel (0) target = $region21
  $region20: #{rec_nn_sequence.1} parent=0 // pred_region
    _
  $region21: #{rec_nn_sequence.1} parent=0 // pred_fallthru
    _
  %p22 = scmp.eq.s32.totalorder 0, 0
  // Predicated region
  $region22: #{rec_nn_sequence.1} parent=0 // pred_check
    %p23 = pneg %p22
  $region23: #{rec_nn_sequence.1} parent=0 // pred_check_branch
    %25 = sbr.rel (%p23) target = $region25
  $region24: #{rec_nn_sequence.1} parent=0 // pred_region
    %v26 = vld [vmem:[%s1] sm:$0xff]
    %vm27 = vcmask 261120
    %28 = vst.msk [vmem:[#allocation2] sm:$0xff] %vm27, %v26
  $region25: #{rec_nn_sequence.1} parent=0 // pred_fallthru
    _
  %v29 = vld [vmem:[%s0] sm:$0xff]
  %v30 = vld [vmem:[%s0 + $0x8] sm:$0xff]
  %v31 = vld [vmem:[%s0 + $0x10] sm:$0xff]
  %v32 = vld [vmem:[%s0 + $0x18] sm:$0xff]
  %v33 = vld [vmem:[%s0 + $0x20] sm:$0xff]
  %v34 = vld [vmem:[%s0 + $0x28] sm:$0xff]
  %v35 = vld [vmem:[%s0 + $0x30] sm:$0xff]
  %v36 = vld [vmem:[%s0 + $0x38] sm:$0xff]
  %v37 = vld [vmem:[%s2] sm:$0xff]
  %v38 = vld [vmem:[%s2 + $0x8] sm:$0xff]
  %v39 = vld [vmem:[%s2 + $0x10] sm:$0xff]
  %v40 = vld [vmem:[%s2 + $0x18] sm:$0xff]
  %v41 = vld [vmem:[%s4] sm:$0x3]
  %v43 = vlaneseq
  %v44 = vshrl.u32 %v43, 7
  %v45 = vsub.s32 0, %v44
  %v46 = vrot.slane %v41, %v45
  %v47 = vlaneseq
  %v48 = vshrl.u32 %v47, 7
  %v49 = vsub.s32 1, %v48
  %v50 = vrot.slane %v41, %v49
  %vm53 = vcmask 130048
  %v55 = vsel %vm53, %v29, 0
  %v58 = vsel %vm53, %v30, 0
  %v61 = vsel %vm53, %v31, 0
  %v64 = vsel %vm53, %v32, 0
  %v67 = vsel %vm53, %v33, 0
  %v70 = vsel %vm53, %v34, 0
  %v73 = vsel %vm53, %v35, 0
  %v76 = vsel %vm53, %v36, 0
  %78 = vmatprep.subr.mxu0 0.0
  %79 = vmatpush1.msra.mxu0 0.0
  %80 = vmatprep.subr.mxu0 0.0
  %81 = vmatpush1.msra.mxu0 0.0
  %82 = vmatprep.subr.mxu0 0.0
  %83 = vmatpush1.msra.mxu0 0.0
  %84 = vmatprep.subr.mxu0 0.0
  %85 = vmatpush1.msra.mxu0 0.0
  %86 = vmatprep.subr.mxu0 0.0
  %87 = vmatpush1.msra.mxu0 0.0
  %88 = vmatprep.subr.mxu0 0.0
  %89 = vmatpush1.msra.mxu0 0.0
  %90 = vmatprep.subr.mxu0 0.0
  %91 = vmatpush1.msra.mxu0 0.0
  %92 = vmatprep.subr.mxu0 0.0
  %93 = vmatpush1.msra.mxu0 0.0
  %94 = vmatprep.subr.mxu0 0.0
  %95 = vmatpush1.msra.mxu0 0.0
  %96 = vmatprep.subr.mxu0 0.0
  %97 = vmatpush1.msra.mxu0 0.0
  %98 = vmatprep.subr.mxu0 0.0
  %99 = vmatpush1.msra.mxu0 0.0
  %100 = vmatprep.subr.mxu0 0.0
  %101 = vmatpush1.msra.mxu0 0.0
  %102 = vmatprep.subr.mxu0 0.0
  %103 = vmatpush1.msra.mxu0 0.0
  %104 = vmatprep.subr.mxu0 0.0
  %105 = vmatpush1.msra.mxu0 0.0
  %106 = vmatprep.subr.mxu0 %v40
  %107 = vmatpush1.msra.mxu0 %v39
  %108 = vmatprep.subr.mxu0 %v38
  %109 = vmatpush1.msra.mxu0 %v37
  %110 = vmatprep.subr.mxu0 0.0
  %111 = vmatpush2.msra.mxu0 0.0
  %112 = vmatprep.subr.mxu0 0.0
  %113 = vmatpush2.msra.mxu0 0.0
  %114 = vmatprep.subr.mxu0 0.0
  %115 = vmatpush2.msra.mxu0 0.0
  %116 = vmatprep.subr.mxu0 0.0
  %117 = vmatpush2.msra.mxu0 0.0
  %118 = vmatprep.subr.mxu0 0.0
  %119 = vmatpush2.msra.mxu0 0.0
  %120 = vmatprep.subr.mxu0 0.0
  %121 = vmatpush2.msra.mxu0 0.0
  %122 = vmatprep.subr.mxu0 0.0
  %123 = vmatpush2.msra.mxu0 0.0
  %124 = vmatprep.subr.mxu0 0.0
  %125 = vmatpush2.msra.mxu0 0.0
  %126 = vmatprep.subr.mxu0 0.0
  %127 = vmatpush2.msra.mxu0 0.0
  %128 = vmatprep.subr.mxu0 0.0
  %129 = vmatpush2.msra.mxu0 0.0
  %130 = vmatprep.subr.mxu0 0.0
  %131 = vmatpush2.msra.mxu0 0.0
  %132 = vmatprep.subr.mxu0 0.0
  %133 = vmatpush2.msra.mxu0 0.0
  %134 = vmatprep.subr.mxu0 0.0
  %135 = vmatpush2.msra.mxu0 0.0
  %136 = vmatprep.subr.mxu0 0.0
  %137 = vmatpush2.msra.mxu0 0.0
  %138 = vmatprep.subr.mxu0 0.0
  %139 = vmatpush2.msra.mxu0 0.0
  %140 = vmatprep.subr.mxu0 0.0
  %141 = vmatpush2.msra.mxu0 0.0
  %142 = vmatprep.mubr.f32.mxu0 0.0
  %143 = vmatmul.mubr.f32.gmra.mxu0 %v55
  %v144 = vpop.f32.mrf.mxu0
  %v145 = vadd.f32 %v46, %v144
  %v146 = vpop.f32.mrf.mxu0
  %v147 = vadd.f32 %v50, %v146
  %148 = vmatprep.mubr.f32.mxu0 0.0
  %149 = vmatmul.mubr.f32.gmra.mxu0 %v58
  %v150 = vpop.f32.mrf.mxu0
  %v151 = vadd.f32 %v46, %v150
  %v152 = vpop.f32.mrf.mxu0
  %v153 = vadd.f32 %v50, %v152
  %154 = vmatprep.mubr.f32.mxu0 0.0
  %155 = vmatmul.mubr.f32.gmra.mxu0 %v61
  %v156 = vpop.f32.mrf.mxu0
  %v157 = vadd.f32 %v46, %v156
  %v158 = vpop.f32.mrf.mxu0
  %v159 = vadd.f32 %v50, %v158
  %160 = vmatprep.mubr.f32.mxu0 0.0
  %161 = vmatmul.mubr.f32.gmra.mxu0 %v64
  %v162 = vpop.f32.mrf.mxu0
  %v163 = vadd.f32 %v46, %v162
  %v164 = vpop.f32.mrf.mxu0
  %v165 = vadd.f32 %v50, %v164
  %166 = vmatprep.mubr.f32.mxu0 0.0
  %167 = vmatmul.mubr.f32.gmra.mxu0 %v67
  %v168 = vpop.f32.mrf.mxu0
  %v169 = vadd.f32 %v46, %v168
  %v170 = vpop.f32.mrf.mxu0
  %v171 = vadd.f32 %v50, %v170
  %172 = vmatprep.mubr.f32.mxu0 0.0
  %173 = vmatmul.mubr.f32.gmra.mxu0 %v70
  %v174 = vpop.f32.mrf.mxu0
  %v175 = vadd.f32 %v46, %v174
  %v176 = vpop.f32.mrf.mxu0
  %v177 = vadd.f32 %v50, %v176
  %178 = vmatprep.mubr.f32.mxu0 0.0
  %179 = vmatmul.mubr.f32.gmra.mxu0 %v73
  %v180 = vpop.f32.mrf.mxu0
  %v181 = vadd.f32 %v46, %v180
  %v182 = vpop.f32.mrf.mxu0
  %v183 = vadd.f32 %v50, %v182
  %184 = vmatprep.mubr.f32.mxu0 0.0
  %185 = vmatmul.mubr.f32.gmra.mxu0 %v76
  %v186 = vpop.f32.mrf.mxu0
  %v187 = vadd.f32 %v46, %v186
  %v188 = vpop.f32.mrf.mxu0
  %v189 = vadd.f32 %v50, %v188
  %190 = vdwg.mxu0
  %v191 = vld [vmem:[#allocation2] sm:$0xff]
  %v192 = vld [vmem:[%s3] sm:$0xff]
  %v193 = vld [vmem:[%s3 + $0x8] sm:$0xff]
  %v194 = vld [vmem:[%s3 + $0x10] sm:$0xff]
  %v195 = vld [vmem:[%s3 + $0x18] sm:$0xff]
  %v196 = vld [vmem:[%s3 + $0x20] sm:$0xff]
  %v197 = vld [vmem:[%s3 + $0x28] sm:$0xff]
  %v198 = vld [vmem:[%s3 + $0x30] sm:$0xff]
  %v199 = vld [vmem:[%s3 + $0x38] sm:$0xff]
  %vm200 = vcmask 261120
  %v202 = vsel %vm200, %v191, 0
  %204 = vmatprep.subr.mxu0 0.0
  %205 = vmatpush1.msra.mxu0 0.0
  %206 = vmatprep.subr.mxu0 0.0
  %207 = vmatpush1.msra.mxu0 0.0
  %208 = vmatprep.subr.mxu0 0.0
  %209 = vmatpush1.msra.mxu0 0.0
  %210 = vmatprep.subr.mxu0 0.0
  %211 = vmatpush1.msra.mxu0 0.0
  %212 = vmatprep.subr.mxu0 0.0
  %213 = vmatpush1.msra.mxu0 0.0
  %214 = vmatprep.subr.mxu0 0.0
  %215 = vmatpush1.msra.mxu0 0.0
  %216 = vmatprep.subr.mxu0 0.0
  %217 = vmatpush1.msra.mxu0 0.0
  %218 = vmatprep.subr.mxu0 0.0
  %219 = vmatpush1.msra.mxu0 0.0
  %220 = vmatprep.subr.mxu0 0.0
  %221 = vmatpush1.msra.mxu0 0.0
  %222 = vmatprep.subr.mxu0 0.0
  %223 = vmatpush1.msra.mxu0 0.0
  %224 = vmatprep.subr.mxu0 0.0
  %225 = vmatpush1.msra.mxu0 0.0
  %226 = vmatprep.subr.mxu0 0.0
  %227 = vmatpush1.msra.mxu0 0.0
  %228 = vmatprep.subr.mxu0 %v199
  %229 = vmatpush1.msra.mxu0 %v198
  %230 = vmatprep.subr.mxu0 %v197
  %231 = vmatpush1.msra.mxu0 %v196
  %232 = vmatprep.subr.mxu0 %v195
  %233 = vmatpush1.msra.mxu0 %v194
  %234 = vmatprep.subr.mxu0 %v193
  %235 = vmatpush1.msra.mxu0 %v192
  %236 = vmatprep.subr.mxu0 0.0
  %237 = vmatpush2.msra.mxu0 0.0
  %238 = vmatprep.subr.mxu0 0.0
  %239 = vmatpush2.msra.mxu0 0.0
  %240 = vmatprep.subr.mxu0 0.0
  %241 = vmatpush2.msra.mxu0 0.0
  %242 = vmatprep.subr.mxu0 0.0
  %243 = vmatpush2.msra.mxu0 0.0
  %244 = vmatprep.subr.mxu0 0.0
  %245 = vmatpush2.msra.mxu0 0.0
  %246 = vmatprep.subr.mxu0 0.0
  %247 = vmatpush2.msra.mxu0 0.0
  %248 = vmatprep.subr.mxu0 0.0
  %249 = vmatpush2.msra.mxu0 0.0
  %250 = vmatprep.subr.mxu0 0.0
  %251 = vmatpush2.msra.mxu0 0.0
  %252 = vmatprep.subr.mxu0 0.0
  %253 = vmatpush2.msra.mxu0 0.0
  %254 = vmatprep.subr.mxu0 0.0
  %255 = vmatpush2.msra.mxu0 0.0
  %256 = vmatprep.subr.mxu0 0.0
  %257 = vmatpush2.msra.mxu0 0.0
  %258 = vmatprep.subr.mxu0 0.0
  %259 = vmatpush2.msra.mxu0 0.0
  %260 = vmatprep.subr.mxu0 0.0
  %261 = vmatpush2.msra.mxu0 0.0
  %262 = vmatprep.subr.mxu0 0.0
  %263 = vmatpush2.msra.mxu0 0.0
  %264 = vmatprep.subr.mxu0 0.0
  %265 = vmatpush2.msra.mxu0 0.0
  %266 = vmatprep.subr.mxu0 0.0
  %267 = vmatpush2.msra.mxu0 0.0
  %268 = vmatprep.mubr.f32.mxu0 0.0
  %269 = vmatmul.mubr.f32.gmra.mxu0 %v202
  %v270 = vpop.f32.mrf.mxu0
  %v271 = vadd.f32 0.0, %v270
  %v272 = vpop.f32.mrf.mxu0
  %v273 = vadd.f32 0.0, %v272
  %274 = vdwg.mxu0
  %v275 = vadd.f32 %v145, %v271
  %v276 = vadd.f32 %v147, %v273
  %277 = vmax.xlane.f32.xlu0 %v275
  %v278 = vpop.xlane.xlu0 %277
  %v279 = vsub.f32 %v275, %v278
  %v280 = vmul.f32 %v279, 1.442695
  %v281 = vpow.pop %v280
  %282 = vadd.xlane.f32.xlu0 %v281
  %v283 = vpop.xlane.xlu0 %282
  %v284 = vlog2.pop %v283
  %v285 = vmul.f32 %v284, 0.6931472
  %v286 = vsub.f32 %v279, %v285
  %287 = vst [vmem:[%s5] sm:$0xff] %v286
  %v288 = vld [vmem:[%s3] sm:$0xff]
  %v289 = vld [vmem:[%s3 + $0x8] sm:$0xff]
  %v290 = vld [vmem:[%s3 + $0x10] sm:$0xff]
  %v291 = vld [vmem:[%s3 + $0x18] sm:$0xff]
  %v292 = vld [vmem:[%s3 + $0x20] sm:$0xff]
  %v293 = vld [vmem:[%s3 + $0x28] sm:$0xff]
  %v294 = vld [vmem:[%s3 + $0x30] sm:$0xff]
  %v295 = vld [vmem:[%s3 + $0x38] sm:$0xff]
  %v297 = vsel %vm200, %v276, 0
  %299 = vmatprep.subr.mxu0 0.0
  %300 = vmatpush1.msra.mxu0 0.0
  %301 = vmatprep.subr.mxu0 0.0
  %302 = vmatpush1.msra.mxu0 0.0
  %303 = vmatprep.subr.mxu0 0.0
  %304 = vmatpush1.msra.mxu0 0.0
  %305 = vmatprep.subr.mxu0 0.0
  %306 = vmatpush1.msra.mxu0 0.0
  %307 = vmatprep.subr.mxu0 0.0
  %308 = vmatpush1.msra.mxu0 0.0
  %309 = vmatprep.subr.mxu0 0.0
  %310 = vmatpush1.msra.mxu0 0.0
  %311 = vmatprep.subr.mxu0 0.0
  %312 = vmatpush1.msra.mxu0 0.0
  %313 = vmatprep.subr.mxu0 0.0
  %314 = vmatpush1.msra.mxu0 0.0
  %315 = vmatprep.subr.mxu0 0.0
  %316 = vmatpush1.msra.mxu0 0.0
  %317 = vmatprep.subr.mxu0 0.0
  %318 = vmatpush1.msra.mxu0 0.0
  %319 = vmatprep.subr.mxu0 0.0
  %320 = vmatpush1.msra.mxu0 0.0
  %321 = vmatprep.subr.mxu0 0.0
  %322 = vmatpush1.msra.mxu0 0.0
  %323 = vmatprep.subr.mxu0 %v295
  %324 = vmatpush1.msra.mxu0 %v294
  %325 = vmatprep.subr.mxu0 %v293
  %326 = vmatpush1.msra.mxu0 %v292
  %327 = vmatprep.subr.mxu0 %v291
  %328 = vmatpush1.msra.mxu0 %v290
  %329 = vmatprep.subr.mxu0 %v289
  %330 = vmatpush1.msra.mxu0 %v288
  %331 = vmatprep.subr.mxu0 0.0
  %332 = vmatpush2.msra.mxu0 0.0
  %333 = vmatprep.subr.mxu0 0.0
  %334 = vmatpush2.msra.mxu0 0.0
  %335 = vmatprep.subr.mxu0 0.0
  %336 = vmatpush2.msra.mxu0 0.0
  %337 = vmatprep.subr.mxu0 0.0
  %338 = vmatpush2.msra.mxu0 0.0
  %339 = vmatprep.subr.mxu0 0.0
  %340 = vmatpush2.msra.mxu0 0.0
  %341 = vmatprep.subr.mxu0 0.0
  %342 = vmatpush2.msra.mxu0 0.0
  %343 = vmatprep.subr.mxu0 0.0
  %344 = vmatpush2.msra.mxu0 0.0
  %345 = vmatprep.subr.mxu0 0.0
  %346 = vmatpush2.msra.mxu0 0.0
  %347 = vmatprep.subr.mxu0 0.0
  %348 = vmatpush2.msra.mxu0 0.0
  %349 = vmatprep.subr.mxu0 0.0
  %350 = vmatpush2.msra.mxu0 0.0
  %351 = vmatprep.subr.mxu0 0.0
  %352 = vmatpush2.msra.mxu0 0.0
  %353 = vmatprep.subr.mxu0 0.0
  %354 = vmatpush2.msra.mxu0 0.0
  %355 = vmatprep.subr.mxu0 0.0
  %356 = vmatpush2.msra.mxu0 0.0
  %357 = vmatprep.subr.mxu0 0.0
  %358 = vmatpush2.msra.mxu0 0.0
  %359 = vmatprep.subr.mxu0 0.0
  %360 = vmatpush2.msra.mxu0 0.0
  %361 = vmatprep.subr.mxu0 0.0
  %362 = vmatpush2.msra.mxu0 0.0
  %363 = vmatprep.mubr.f32.mxu0 0.0
  %364 = vmatmul.mubr.f32.gmra.mxu0 %v297
  %v365 = vpop.f32.mrf.mxu0
  %v366 = vadd.f32 0.0, %v365
  %v367 = vpop.f32.mrf.mxu0
  %v368 = vadd.f32 0.0, %v367
  %369 = vdwg.mxu0
  %v370 = vadd.f32 %v151, %v366
  %v371 = vadd.f32 %v153, %v368
  %372 = vmax.xlane.f32.xlu0 %v370
  %v373 = vpop.xlane.xlu0 %372
  %v374 = vsub.f32 %v370, %v373
  %v375 = vmul.f32 %v374, 1.442695
  %v376 = vpow.pop %v375
  %377 = vadd.xlane.f32.xlu0 %v376
  %v378 = vpop.xlane.xlu0 %377
  %v379 = vlog2.pop %v378
  %v380 = vmul.f32 %v379, 0.6931472
  %v381 = vsub.f32 %v374, %v380
  %382 = vst [vmem:[%s5 + $0x8] sm:$0xff] %v381
  %v383 = vld [vmem:[%s3] sm:$0xff]
  %v384 = vld [vmem:[%s3 + $0x8] sm:$0xff]
  %v385 = vld [vmem:[%s3 + $0x10] sm:$0xff]
  %v386 = vld [vmem:[%s3 + $0x18] sm:$0xff]
  %v387 = vld [vmem:[%s3 + $0x20] sm:$0xff]
  %v388 = vld [vmem:[%s3 + $0x28] sm:$0xff]
  %v389 = vld [vmem:[%s3 + $0x30] sm:$0xff]
  %v390 = vld [vmem:[%s3 + $0x38] sm:$0xff]
  %v392 = vsel %vm200, %v371, 0
  %394 = vmatprep.subr.mxu0 0.0
  %395 = vmatpush1.msra.mxu0 0.0
  %396 = vmatprep.subr.mxu0 0.0
  %397 = vmatpush1.msra.mxu0 0.0
  %398 = vmatprep.subr.mxu0 0.0
  %399 = vmatpush1.msra.mxu0 0.0
  %400 = vmatprep.subr.mxu0 0.0
  %401 = vmatpush1.msra.mxu0 0.0
  %402 = vmatprep.subr.mxu0 0.0
  %403 = vmatpush1.msra.mxu0 0.0
  %404 = vmatprep.subr.mxu0 0.0
  %405 = vmatpush1.msra.mxu0 0.0
  %406 = vmatprep.subr.mxu0 0.0
  %407 = vmatpush1.msra.mxu0 0.0
  %408 = vmatprep.subr.mxu0 0.0
  %409 = vmatpush1.msra.mxu0 0.0
  %410 = vmatprep.subr.mxu0 0.0
  %411 = vmatpush1.msra.mxu0 0.0
  %412 = vmatprep.subr.mxu0 0.0
  %413 = vmatpush1.msra.mxu0 0.0
  %414 = vmatprep.subr.mxu0 0.0
  %415 = vmatpush1.msra.mxu0 0.0
  %416 = vmatprep.subr.mxu0 0.0
  %417 = vmatpush1.msra.mxu0 0.0
  %418 = vmatprep.subr.mxu0 %v390
  %419 = vmatpush1.msra.mxu0 %v389
  %420 = vmatprep.subr.mxu0 %v388
  %421 = vmatpush1.msra.mxu0 %v387
  %422 = vmatprep.subr.mxu0 %v386
  %423 = vmatpush1.msra.mxu0 %v385
  %424 = vmatprep.subr.mxu0 %v384
  %425 = vmatpush1.msra.mxu0 %v383
  %426 = vmatprep.subr.mxu0 0.0
  %427 = vmatpush2.msra.mxu0 0.0
  %428 = vmatprep.subr.mxu0 0.0
  %429 = vmatpush2.msra.mxu0 0.0
  %430 = vmatprep.subr.mxu0 0.0
  %431 = vmatpush2.msra.mxu0 0.0
  %432 = vmatprep.subr.mxu0 0.0
  %433 = vmatpush2.msra.mxu0 0.0
  %434 = vmatprep.subr.mxu0 0.0
  %435 = vmatpush2.msra.mxu0 0.0
  %436 = vmatprep.subr.mxu0 0.0
  %437 = vmatpush2.msra.mxu0 0.0
  %438 = vmatprep.subr.mxu0 0.0
  %439 = vmatpush2.msra.mxu0 0.0
  %440 = vmatprep.subr.mxu0 0.0
  %441 = vmatpush2.msra.mxu0 0.0
  %442 = vmatprep.subr.mxu0 0.0
  %443 = vmatpush2.msra.mxu0 0.0
  %444 = vmatprep.subr.mxu0 0.0
  %445 = vmatpush2.msra.mxu0 0.0
  %446 = vmatprep.subr.mxu0 0.0
  %447 = vmatpush2.msra.mxu0 0.0
  %448 = vmatprep.subr.mxu0 0.0
  %449 = vmatpush2.msra.mxu0 0.0
  %450 = vmatprep.subr.mxu0 0.0
  %451 = vmatpush2.msra.mxu0 0.0
  %452 = vmatprep.subr.mxu0 0.0
  %453 = vmatpush2.msra.mxu0 0.0
  %454 = vmatprep.subr.mxu0 0.0
  %455 = vmatpush2.msra.mxu0 0.0
  %456 = vmatprep.subr.mxu0 0.0
  %457 = vmatpush2.msra.mxu0 0.0
  %458 = vmatprep.mubr.f32.mxu0 0.0
  %459 = vmatmul.mubr.f32.gmra.mxu0 %v392
  %v460 = vpop.f32.mrf.mxu0
  %v461 = vadd.f32 0.0, %v460
  %v462 = vpop.f32.mrf.mxu0
  %v463 = vadd.f32 0.0, %v462
  %464 = vdwg.mxu0
  %v465 = vadd.f32 %v157, %v461
  %v466 = vadd.f32 %v159, %v463
  %467 = vmax.xlane.f32.xlu0 %v465
  %v468 = vpop.xlane.xlu0 %467
  %v469 = vsub.f32 %v465, %v468
  %v470 = vmul.f32 %v469, 1.442695
  %v471 = vpow.pop %v470
  %472 = vadd.xlane.f32.xlu0 %v471
  %v473 = vpop.xlane.xlu0 %472
  %v474 = vlog2.pop %v473
  %v475 = vmul.f32 %v474, 0.6931472
  %v476 = vsub.f32 %v469, %v475
  %477 = vst [vmem:[%s5 + $0x10] sm:$0xff] %v476
  %v478 = vld [vmem:[%s3] sm:$0xff]
  %v479 = vld [vmem:[%s3 + $0x8] sm:$0xff]
  %v480 = vld [vmem:[%s3 + $0x10] sm:$0xff]
  %v481 = vld [vmem:[%s3 + $0x18] sm:$0xff]
  %v482 = vld [vmem:[%s3 + $0x20] sm:$0xff]
  %v483 = vld [vmem:[%s3 + $0x28] sm:$0xff]
  %v484 = vld [vmem:[%s3 + $0x30] sm:$0xff]
  %v485 = vld [vmem:[%s3 + $0x38] sm:$0xff]
  %v487 = vsel %vm200, %v466, 0
  %489 = vmatprep.subr.mxu0 0.0
  %490 = vmatpush1.msra.mxu0 0.0
  %491 = vmatprep.subr.mxu0 0.0
  %492 = vmatpush1.msra.mxu0 0.0
  %493 = vmatprep.subr.mxu0 0.0
  %494 = vmatpush1.msra.mxu0 0.0
  %495 = vmatprep.subr.mxu0 0.0
  %496 = vmatpush1.msra.mxu0 0.0
  %497 = vmatprep.subr.mxu0 0.0
  %498 = vmatpush1.msra.mxu0 0.0
  %499 = vmatprep.subr.mxu0 0.0
  %500 = vmatpush1.msra.mxu0 0.0
  %501 = vmatprep.subr.mxu0 0.0
  %502 = vmatpush1.msra.mxu0 0.0
  %503 = vmatprep.subr.mxu0 0.0
  %504 = vmatpush1.msra.mxu0 0.0
  %505 = vmatprep.subr.mxu0 0.0
  %506 = vmatpush1.msra.mxu0 0.0
  %507 = vmatprep.subr.mxu0 0.0
  %508 = vmatpush1.msra.mxu0 0.0
  %509 = vmatprep.subr.mxu0 0.0
  %510 = vmatpush1.msra.mxu0 0.0
  %511 = vmatprep.subr.mxu0 0.0
  %512 = vmatpush1.msra.mxu0 0.0
  %513 = vmatprep.subr.mxu0 %v485
  %514 = vmatpush1.msra.mxu0 %v484
  %515 = vmatprep.subr.mxu0 %v483
  %516 = vmatpush1.msra.mxu0 %v482
  %517 = vmatprep.subr.mxu0 %v481
  %518 = vmatpush1.msra.mxu0 %v480
  %519 = vmatprep.subr.mxu0 %v479
  %520 = vmatpush1.msra.mxu0 %v478
  %521 = vmatprep.subr.mxu0 0.0
  %522 = vmatpush2.msra.mxu0 0.0
  %523 = vmatprep.subr.mxu0 0.0
  %524 = vmatpush2.msra.mxu0 0.0
  %525 = vmatprep.subr.mxu0 0.0
  %526 = vmatpush2.msra.mxu0 0.0
  %527 = vmatprep.subr.mxu0 0.0
  %528 = vmatpush2.msra.mxu0 0.0
  %529 = vmatprep.subr.mxu0 0.0
  %530 = vmatpush2.msra.mxu0 0.0
  %531 = vmatprep.subr.mxu0 0.0
  %532 = vmatpush2.msra.mxu0 0.0
  %533 = vmatprep.subr.mxu0 0.0
  %534 = vmatpush2.msra.mxu0 0.0
  %535 = vmatprep.subr.mxu0 0.0
  %536 = vmatpush2.msra.mxu0 0.0
  %537 = vmatprep.subr.mxu0 0.0
  %538 = vmatpush2.msra.mxu0 0.0
  %539 = vmatprep.subr.mxu0 0.0
  %540 = vmatpush2.msra.mxu0 0.0
  %541 = vmatprep.subr.mxu0 0.0
  %542 = vmatpush2.msra.mxu0 0.0
  %543 = vmatprep.subr.mxu0 0.0
  %544 = vmatpush2.msra.mxu0 0.0
  %545 = vmatprep.subr.mxu0 0.0
  %546 = vmatpush2.msra.mxu0 0.0
  %547 = vmatprep.subr.mxu0 0.0
  %548 = vmatpush2.msra.mxu0 0.0
  %549 = vmatprep.subr.mxu0 0.0
  %550 = vmatpush2.msra.mxu0 0.0
  %551 = vmatprep.subr.mxu0 0.0
  %552 = vmatpush2.msra.mxu0 0.0
  %553 = vmatprep.mubr.f32.mxu0 0.0
  %554 = vmatmul.mubr.f32.gmra.mxu0 %v487
  %v555 = vpop.f32.mrf.mxu0
  %v556 = vadd.f32 0.0, %v555
  %v557 = vpop.f32.mrf.mxu0
  %v558 = vadd.f32 0.0, %v557
  %559 = vdwg.mxu0
  %v560 = vadd.f32 %v163, %v556
  %v561 = vadd.f32 %v165, %v558
  %562 = vmax.xlane.f32.xlu0 %v560
  %v563 = vpop.xlane.xlu0 %562
  %v564 = vsub.f32 %v560, %v563
  %v565 = vmul.f32 %v564, 1.442695
  %v566 = vpow.pop %v565
  %567 = vadd.xlane.f32.xlu0 %v566
  %v568 = vpop.xlane.xlu0 %567
  %v569 = vlog2.pop %v568
  %v570 = vmul.f32 %v569, 0.6931472
  %v571 = vsub.f32 %v564, %v570
  %572 = vst [vmem:[%s5 + $0x18] sm:$0xff] %v571
  %v573 = vld [vmem:[%s3] sm:$0xff]
  %v574 = vld [vmem:[%s3 + $0x8] sm:$0xff]
  %v575 = vld [vmem:[%s3 + $0x10] sm:$0xff]
  %v576 = vld [vmem:[%s3 + $0x18] sm:$0xff]
  %v577 = vld [vmem:[%s3 + $0x20] sm:$0xff]
  %v578 = vld [vmem:[%s3 + $0x28] sm:$0xff]
  %v579 = vld [vmem:[%s3 + $0x30] sm:$0xff]
  %v580 = vld [vmem:[%s3 + $0x38] sm:$0xff]
  %v582 = vsel %vm200, %v561, 0
  %584 = vmatprep.subr.mxu0 0.0
  %585 = vmatpush1.msra.mxu0 0.0
  %586 = vmatprep.subr.mxu0 0.0
  %587 = vmatpush1.msra.mxu0 0.0
  %588 = vmatprep.subr.mxu0 0.0
  %589 = vmatpush1.msra.mxu0 0.0
  %590 = vmatprep.subr.mxu0 0.0
  %591 = vmatpush1.msra.mxu0 0.0
  %592 = vmatprep.subr.mxu0 0.0
  %593 = vmatpush1.msra.mxu0 0.0
  %594 = vmatprep.subr.mxu0 0.0
  %595 = vmatpush1.msra.mxu0 0.0
  %596 = vmatprep.subr.mxu0 0.0
  %597 = vmatpush1.msra.mxu0 0.0
  %598 = vmatprep.subr.mxu0 0.0
  %599 = vmatpush1.msra.mxu0 0.0
  %600 = vmatprep.subr.mxu0 0.0
  %601 = vmatpush1.msra.mxu0 0.0
  %602 = vmatprep.subr.mxu0 0.0
  %603 = vmatpush1.msra.mxu0 0.0
  %604 = vmatprep.subr.mxu0 0.0
  %605 = vmatpush1.msra.mxu0 0.0
  %606 = vmatprep.subr.mxu0 0.0
  %607 = vmatpush1.msra.mxu0 0.0
  %608 = vmatprep.subr.mxu0 %v580
  %609 = vmatpush1.msra.mxu0 %v579
  %610 = vmatprep.subr.mxu0 %v578
  %611 = vmatpush1.msra.mxu0 %v577
  %612 = vmatprep.subr.mxu0 %v576
  %613 = vmatpush1.msra.mxu0 %v575
  %614 = vmatprep.subr.mxu0 %v574
  %615 = vmatpush1.msra.mxu0 %v573
  %616 = vmatprep.subr.mxu0 0.0
  %617 = vmatpush2.msra.mxu0 0.0
  %618 = vmatprep.subr.mxu0 0.0
  %619 = vmatpush2.msra.mxu0 0.0
  %620 = vmatprep.subr.mxu0 0.0
  %621 = vmatpush2.msra.mxu0 0.0
  %622 = vmatprep.subr.mxu0 0.0
  %623 = vmatpush2.msra.mxu0 0.0
  %624 = vmatprep.subr.mxu0 0.0
  %625 = vmatpush2.msra.mxu0 0.0
  %626 = vmatprep.subr.mxu0 0.0
  %627 = vmatpush2.msra.mxu0 0.0
  %628 = vmatprep.subr.mxu0 0.0
  %629 = vmatpush2.msra.mxu0 0.0
  %630 = vmatprep.subr.mxu0 0.0
  %631 = vmatpush2.msra.mxu0 0.0
  %632 = vmatprep.subr.mxu0 0.0
  %633 = vmatpush2.msra.mxu0 0.0
  %634 = vmatprep.subr.mxu0 0.0
  %635 = vmatpush2.msra.mxu0 0.0
  %636 = vmatprep.subr.mxu0 0.0
  %637 = vmatpush2.msra.mxu0 0.0
  %638 = vmatprep.subr.mxu0 0.0
  %639 = vmatpush2.msra.mxu0 0.0
  %640 = vmatprep.subr.mxu0 0.0
  %641 = vmatpush2.msra.mxu0 0.0
  %642 = vmatprep.subr.mxu0 0.0
  %643 = vmatpush2.msra.mxu0 0.0
  %644 = vmatprep.subr.mxu0 0.0
  %645 = vmatpush2.msra.mxu0 0.0
  %646 = vmatprep.subr.mxu0 0.0
  %647 = vmatpush2.msra.mxu0 0.0
  %648 = vmatprep.mubr.f32.mxu0 0.0
  %649 = vmatmul.mubr.f32.gmra.mxu0 %v582
  %v650 = vpop.f32.mrf.mxu0
  %v651 = vadd.f32 0.0, %v650
  %v652 = vpop.f32.mrf.mxu0
  %v653 = vadd.f32 0.0, %v652
  %654 = vdwg.mxu0
  %v655 = vadd.f32 %v169, %v651
  %v656 = vadd.f32 %v171, %v653
  %657 = vmax.xlane.f32.xlu0 %v655
  %v658 = vpop.xlane.xlu0 %657
  %v659 = vsub.f32 %v655, %v658
  %v660 = vmul.f32 %v659, 1.442695
  %v661 = vpow.pop %v660
  %662 = vadd.xlane.f32.xlu0 %v661
  %v663 = vpop.xlane.xlu0 %662
  %v664 = vlog2.pop %v663
  %v665 = vmul.f32 %v664, 0.6931472
  %v666 = vsub.f32 %v659, %v665
  %667 = vst [vmem:[%s5 + $0x20] sm:$0xff] %v666
  %v668 = vld [vmem:[%s3] sm:$0xff]
  %v669 = vld [vmem:[%s3 + $0x8] sm:$0xff]
  %v670 = vld [vmem:[%s3 + $0x10] sm:$0xff]
  %v671 = vld [vmem:[%s3 + $0x18] sm:$0xff]
  %v672 = vld [vmem:[%s3 + $0x20] sm:$0xff]
  %v673 = vld [vmem:[%s3 + $0x28] sm:$0xff]
  %v674 = vld [vmem:[%s3 + $0x30] sm:$0xff]
  %v675 = vld [vmem:[%s3 + $0x38] sm:$0xff]
  %v677 = vsel %vm200, %v656, 0
  %679 = vmatprep.subr.mxu0 0.0
  %680 = vmatpush1.msra.mxu0 0.0
  %681 = vmatprep.subr.mxu0 0.0
  %682 = vmatpush1.msra.mxu0 0.0
  %683 = vmatprep.subr.mxu0 0.0
  %684 = vmatpush1.msra.mxu0 0.0
  %685 = vmatprep.subr.mxu0 0.0
  %686 = vmatpush1.msra.mxu0 0.0
  %687 = vmatprep.subr.mxu0 0.0
  %688 = vmatpush1.msra.mxu0 0.0
  %689 = vmatprep.subr.mxu0 0.0
  %690 = vmatpush1.msra.mxu0 0.0
  %691 = vmatprep.subr.mxu0 0.0
  %692 = vmatpush1.msra.mxu0 0.0
  %693 = vmatprep.subr.mxu0 0.0
  %694 = vmatpush1.msra.mxu0 0.0
  %695 = vmatprep.subr.mxu0 0.0
  %696 = vmatpush1.msra.mxu0 0.0
  %697 = vmatprep.subr.mxu0 0.0
  %698 = vmatpush1.msra.mxu0 0.0
  %699 = vmatprep.subr.mxu0 0.0
  %700 = vmatpush1.msra.mxu0 0.0
  %701 = vmatprep.subr.mxu0 0.0
  %702 = vmatpush1.msra.mxu0 0.0
  %703 = vmatprep.subr.mxu0 %v675
  %704 = vmatpush1.msra.mxu0 %v674
  %705 = vmatprep.subr.mxu0 %v673
  %706 = vmatpush1.msra.mxu0 %v672
  %707 = vmatprep.subr.mxu0 %v671
  %708 = vmatpush1.msra.mxu0 %v670
  %709 = vmatprep.subr.mxu0 %v669
  %710 = vmatpush1.msra.mxu0 %v668
  %711 = vmatprep.subr.mxu0 0.0
  %712 = vmatpush2.msra.mxu0 0.0
  %713 = vmatprep.subr.mxu0 0.0
  %714 = vmatpush2.msra.mxu0 0.0
  %715 = vmatprep.subr.mxu0 0.0
  %716 = vmatpush2.msra.mxu0 0.0
  %717 = vmatprep.subr.mxu0 0.0
  %718 = vmatpush2.msra.mxu0 0.0
  %719 = vmatprep.subr.mxu0 0.0
  %720 = vmatpush2.msra.mxu0 0.0
  %721 = vmatprep.subr.mxu0 0.0
  %722 = vmatpush2.msra.mxu0 0.0
  %723 = vmatprep.subr.mxu0 0.0
  %724 = vmatpush2.msra.mxu0 0.0
  %725 = vmatprep.subr.mxu0 0.0
  %726 = vmatpush2.msra.mxu0 0.0
  %727 = vmatprep.subr.mxu0 0.0
  %728 = vmatpush2.msra.mxu0 0.0
  %729 = vmatprep.subr.mxu0 0.0
  %730 = vmatpush2.msra.mxu0 0.0
  %731 = vmatprep.subr.mxu0 0.0
  %732 = vmatpush2.msra.mxu0 0.0
  %733 = vmatprep.subr.mxu0 0.0
  %734 = vmatpush2.msra.mxu0 0.0
  %735 = vmatprep.subr.mxu0 0.0
  %736 = vmatpush2.msra.mxu0 0.0
  %737 = vmatprep.subr.mxu0 0.0
  %738 = vmatpush2.msra.mxu0 0.0
  %739 = vmatprep.subr.mxu0 0.0
  %740 = vmatpush2.msra.mxu0 0.0
  %741 = vmatprep.subr.mxu0 0.0
  %742 = vmatpush2.msra.mxu0 0.0
  %743 = vmatprep.mubr.f32.mxu0 0.0
  %744 = vmatmul.mubr.f32.gmra.mxu0 %v677
  %v745 = vpop.f32.mrf.mxu0
  %v746 = vadd.f32 0.0, %v745
  %v747 = vpop.f32.mrf.mxu0
  %v748 = vadd.f32 0.0, %v747
  %749 = vdwg.mxu0
  %v750 = vadd.f32 %v175, %v746
  %v751 = vadd.f32 %v177, %v748
  %752 = vmax.xlane.f32.xlu0 %v750
  %v753 = vpop.xlane.xlu0 %752
  %v754 = vsub.f32 %v750, %v753
  %v755 = vmul.f32 %v754, 1.442695
  %v756 = vpow.pop %v755
  %757 = vadd.xlane.f32.xlu0 %v756
  %v758 = vpop.xlane.xlu0 %757
  %v759 = vlog2.pop %v758
  %v760 = vmul.f32 %v759, 0.6931472
  %v761 = vsub.f32 %v754, %v760
  %762 = vst [vmem:[%s5 + $0x28] sm:$0xff] %v761
  %v763 = vld [vmem:[%s3] sm:$0xff]
  %v764 = vld [vmem:[%s3 + $0x8] sm:$0xff]
  %v765 = vld [vmem:[%s3 + $0x10] sm:$0xff]
  %v766 = vld [vmem:[%s3 + $0x18] sm:$0xff]
  %v767 = vld [vmem:[%s3 + $0x20] sm:$0xff]
  %v768 = vld [vmem:[%s3 + $0x28] sm:$0xff]
  %v769 = vld [vmem:[%s3 + $0x30] sm:$0xff]
  %v770 = vld [vmem:[%s3 + $0x38] sm:$0xff]
  %v772 = vsel %vm200, %v751, 0
  %774 = vmatprep.subr.mxu0 0.0
  %775 = vmatpush1.msra.mxu0 0.0
  %776 = vmatprep.subr.mxu0 0.0
  %777 = vmatpush1.msra.mxu0 0.0
  %778 = vmatprep.subr.mxu0 0.0
  %779 = vmatpush1.msra.mxu0 0.0
  %780 = vmatprep.subr.mxu0 0.0
  %781 = vmatpush1.msra.mxu0 0.0
  %782 = vmatprep.subr.mxu0 0.0
  %783 = vmatpush1.msra.mxu0 0.0
  %784 = vmatprep.subr.mxu0 0.0
  %785 = vmatpush1.msra.mxu0 0.0
  %786 = vmatprep.subr.mxu0 0.0
  %787 = vmatpush1.msra.mxu0 0.0
  %788 = vmatprep.subr.mxu0 0.0
  %789 = vmatpush1.msra.mxu0 0.0
  %790 = vmatprep.subr.mxu0 0.0
  %791 = vmatpush1.msra.mxu0 0.0
  %792 = vmatprep.subr.mxu0 0.0
  %793 = vmatpush1.msra.mxu0 0.0
  %794 = vmatprep.subr.mxu0 0.0
  %795 = vmatpush1.msra.mxu0 0.0
  %796 = vmatprep.subr.mxu0 0.0
  %797 = vmatpush1.msra.mxu0 0.0
  %798 = vmatprep.subr.mxu0 %v770
  %799 = vmatpush1.msra.mxu0 %v769
  %800 = vmatprep.subr.mxu0 %v768
  %801 = vmatpush1.msra.mxu0 %v767
  %802 = vmatprep.subr.mxu0 %v766
  %803 = vmatpush1.msra.mxu0 %v765
  %804 = vmatprep.subr.mxu0 %v764
  %805 = vmatpush1.msra.mxu0 %v763
  %806 = vmatprep.subr.mxu0 0.0
  %807 = vmatpush2.msra.mxu0 0.0
  %808 = vmatprep.subr.mxu0 0.0
  %809 = vmatpush2.msra.mxu0 0.0
  %810 = vmatprep.subr.mxu0 0.0
  %811 = vmatpush2.msra.mxu0 0.0
  %812 = vmatprep.subr.mxu0 0.0
  %813 = vmatpush2.msra.mxu0 0.0
  %814 = vmatprep.subr.mxu0 0.0
  %815 = vmatpush2.msra.mxu0 0.0
  %816 = vmatprep.subr.mxu0 0.0
  %817 = vmatpush2.msra.mxu0 0.0
  %818 = vmatprep.subr.mxu0 0.0
  %819 = vmatpush2.msra.mxu0 0.0
  %820 = vmatprep.subr.mxu0 0.0
  %821 = vmatpush2.msra.mxu0 0.0
  %822 = vmatprep.subr.mxu0 0.0
  %823 = vmatpush2.msra.mxu0 0.0
  %824 = vmatprep.subr.mxu0 0.0
  %825 = vmatpush2.msra.mxu0 0.0
  %826 = vmatprep.subr.mxu0 0.0
  %827 = vmatpush2.msra.mxu0 0.0
  %828 = vmatprep.subr.mxu0 0.0
  %829 = vmatpush2.msra.mxu0 0.0
  %830 = vmatprep.subr.mxu0 0.0
  %831 = vmatpush2.msra.mxu0 0.0
  %832 = vmatprep.subr.mxu0 0.0
  %833 = vmatpush2.msra.mxu0 0.0
  %834 = vmatprep.subr.mxu0 0.0
  %835 = vmatpush2.msra.mxu0 0.0
  %836 = vmatprep.subr.mxu0 0.0
  %837 = vmatpush2.msra.mxu0 0.0
  %838 = vmatprep.mubr.f32.mxu0 0.0
  %839 = vmatmul.mubr.f32.gmra.mxu0 %v772
  %v840 = vpop.f32.mrf.mxu0
  %v841 = vadd.f32 0.0, %v840
  %v842 = vpop.f32.mrf.mxu0
  %v843 = vadd.f32 0.0, %v842
  %844 = vdwg.mxu0
  %v845 = vadd.f32 %v181, %v841
  %v846 = vadd.f32 %v183, %v843
  %847 = vmax.xlane.f32.xlu0 %v845
  %v848 = vpop.xlane.xlu0 %847
  %v849 = vsub.f32 %v845, %v848
  %v850 = vmul.f32 %v849, 1.442695
  %v851 = vpow.pop %v850
  %852 = vadd.xlane.f32.xlu0 %v851
  %v853 = vpop.xlane.xlu0 %852
  %v854 = vlog2.pop %v853
  %v855 = vmul.f32 %v854, 0.6931472
  %v856 = vsub.f32 %v849, %v855
  %857 = vst [vmem:[%s5 + $0x30] sm:$0xff] %v856
  %v858 = vld [vmem:[%s3] sm:$0xff]
  %v859 = vld [vmem:[%s3 + $0x8] sm:$0xff]
  %v860 = vld [vmem:[%s3 + $0x10] sm:$0xff]
  %v861 = vld [vmem:[%s3 + $0x18] sm:$0xff]
  %v862 = vld [vmem:[%s3 + $0x20] sm:$0xff]
  %v863 = vld [vmem:[%s3 + $0x28] sm:$0xff]
  %v864 = vld [vmem:[%s3 + $0x30] sm:$0xff]
  %v865 = vld [vmem:[%s3 + $0x38] sm:$0xff]
  %v867 = vsel %vm200, %v846, 0
  %869 = vmatprep.subr.mxu0 0.0
  %870 = vmatpush1.msra.mxu0 0.0
  %871 = vmatprep.subr.mxu0 0.0
  %872 = vmatpush1.msra.mxu0 0.0
  %873 = vmatprep.subr.mxu0 0.0
  %874 = vmatpush1.msra.mxu0 0.0
  %875 = vmatprep.subr.mxu0 0.0
  %876 = vmatpush1.msra.mxu0 0.0
  %877 = vmatprep.subr.mxu0 0.0
  %878 = vmatpush1.msra.mxu0 0.0
  %879 = vmatprep.subr.mxu0 0.0
  %880 = vmatpush1.msra.mxu0 0.0
  %881 = vmatprep.subr.mxu0 0.0
  %882 = vmatpush1.msra.mxu0 0.0
  %883 = vmatprep.subr.mxu0 0.0
  %884 = vmatpush1.msra.mxu0 0.0
  %885 = vmatprep.subr.mxu0 0.0
  %886 = vmatpush1.msra.mxu0 0.0
  %887 = vmatprep.subr.mxu0 0.0
  %888 = vmatpush1.msra.mxu0 0.0
  %889 = vmatprep.subr.mxu0 0.0
  %890 = vmatpush1.msra.mxu0 0.0
  %891 = vmatprep.subr.mxu0 0.0
  %892 = vmatpush1.msra.mxu0 0.0
  %893 = vmatprep.subr.mxu0 %v865
  %894 = vmatpush1.msra.mxu0 %v864
  %895 = vmatprep.subr.mxu0 %v863
  %896 = vmatpush1.msra.mxu0 %v862
  %897 = vmatprep.subr.mxu0 %v861
  %898 = vmatpush1.msra.mxu0 %v860
  %899 = vmatprep.subr.mxu0 %v859
  %900 = vmatpush1.msra.mxu0 %v858
  %901 = vmatprep.subr.mxu0 0.0
  %902 = vmatpush2.msra.mxu0 0.0
  %903 = vmatprep.subr.mxu0 0.0
  %904 = vmatpush2.msra.mxu0 0.0
  %905 = vmatprep.subr.mxu0 0.0
  %906 = vmatpush2.msra.mxu0 0.0
  %907 = vmatprep.subr.mxu0 0.0
  %908 = vmatpush2.msra.mxu0 0.0
  %909 = vmatprep.subr.mxu0 0.0
  %910 = vmatpush2.msra.mxu0 0.0
  %911 = vmatprep.subr.mxu0 0.0
  %912 = vmatpush2.msra.mxu0 0.0
  %913 = vmatprep.subr.mxu0 0.0
  %914 = vmatpush2.msra.mxu0 0.0
  %915 = vmatprep.subr.mxu0 0.0
  %916 = vmatpush2.msra.mxu0 0.0
  %917 = vmatprep.subr.mxu0 0.0
  %918 = vmatpush2.msra.mxu0 0.0
  %919 = vmatprep.subr.mxu0 0.0
  %920 = vmatpush2.msra.mxu0 0.0
  %921 = vmatprep.subr.mxu0 0.0
  %922 = vmatpush2.msra.mxu0 0.0
  %923 = vmatprep.subr.mxu0 0.0
  %924 = vmatpush2.msra.mxu0 0.0
  %925 = vmatprep.subr.mxu0 0.0
  %926 = vmatpush2.msra.mxu0 0.0
  %927 = vmatprep.subr.mxu0 0.0
  %928 = vmatpush2.msra.mxu0 0.0
  %929 = vmatprep.subr.mxu0 0.0
  %930 = vmatpush2.msra.mxu0 0.0
  %931 = vmatprep.subr.mxu0 0.0
  %932 = vmatpush2.msra.mxu0 0.0
  %933 = vmatprep.mubr.f32.mxu0 0.0
  %934 = vmatmul.mubr.f32.gmra.mxu0 %v867
  %v935 = vpop.f32.mrf.mxu0
  %v936 = vadd.f32 0.0, %v935
  %v937 = vpop.f32.mrf.mxu0
  %v938 = vadd.f32 0.0, %v937
  %939 = vdwg.mxu0
  %v940 = vadd.f32 %v187, %v936
  %v941 = vadd.f32 %v189, %v938
  %942 = vmax.xlane.f32.xlu0 %v940
  %v943 = vpop.xlane.xlu0 %942
  %v944 = vsub.f32 %v940, %v943
  %v945 = vmul.f32 %v944, 1.442695
  %v946 = vpow.pop %v945
  %947 = vadd.xlane.f32.xlu0 %v946
  %v948 = vpop.xlane.xlu0 %947
  %v949 = vlog2.pop %v948
  %v950 = vmul.f32 %v949, 0.6931472
  %v951 = vsub.f32 %v944, %v950
  %952 = vst [vmem:[%s5 + $0x38] sm:$0xff] %v951
  %953 = vst.msk [vmem:[#allocation2] sm:$0xff] %vm200, %v941
  // Predicated region
  $region26: #{rec_nn_sequence.1} parent=0 // pred_check
    %p954 = pneg %p22
  $region27: #{rec_nn_sequence.1} parent=0 // pred_check_branch
    %956 = sbr.rel (%p954) target = $region29
  $region28: #{rec_nn_sequence.1} parent=0 // pred_region
    %957 = vst.msk [vmem:[%s6] sm:$0xff] %vm200, %v941
  $region29: #{rec_nn_sequence.1} parent=0 // pred_fallthru
    _
  // Predicated region
  $region30: #{rec_nn_sequence.1} parent=0 // pred_check
    _
  $region31: #{rec_nn_sequence.1} parent=0 // pred_check_branch
    %959 = sbr.rel (0) target = $region33
  $region32: #{rec_nn_sequence.1} parent=0 // pred_region
    _
  $region33: #{rec_nn_sequence.1} parent=0 // pred_fallthru
    _
  // Predicated region
  $region34: #{rec_nn_sequence.1} parent=0 // pred_check
    _
  $region35: #{rec_nn_sequence.1} parent=0 // pred_check_branch
    %961 = sbr.rel (0) target = $region37
  $region36: #{rec_nn_sequence.1} parent=0 // pred_region
    _
  $region37: #{rec_nn_sequence.1} parent=0 // pred_fallthru
    _
  // Predicated region
  $region38: #{rec_nn_sequence.1} parent=0 // pred_check
    _
  $region39: #{rec_nn_sequence.1} parent=0 // pred_check_branch
    %963 = sbr.rel (0) target = $region41
  $region40: #{rec_nn_sequence.1} parent=0 // pred_region
    _
  $region41: #{rec_nn_sequence.1} parent=0 // pred_fallthru
    _
  // Predicated region
  $region42: #{rec_nn_sequence.1} parent=0 // pred_check
    _
  $region43: #{rec_nn_sequence.1} parent=0 // pred_check_branch
    %965 = sbr.rel (0) target = $region45
  $region44: #{rec_nn_sequence.1} parent=0 // pred_region
    _
  $region45: #{rec_nn_sequence.1} parent=0 // pred_fallthru
    _

</llo_original>
